<compile_context>
chip_gen: v5e
topology: v5e:2x2
jax: 0.10.0
libtpu: 0.0.40
codegen_flags: <defaults>
</compile_context>

<pallas_src>
import jax
import jax.numpy as jnp
from jax.experimental import pallas as pl
from jax.experimental.pallas import tpu as pltpu

INPUT_SIZE = 1
HIDDEN = 32


def _rnn_kernel(x_ref, h0_ref, wih_ref, whh_ref, bias_ref, wout_ref, bout_ref,
                y_ref, hT_ref):
    """Whole-sequence RNN forward, single kernel invocation.

    x_ref    : (B, T)   inputs (INPUT_SIZE == 1, trailing dim squeezed)
    h0_ref   : (B, H)   initial hidden state
    wih_ref  : (1, H)   W_ih^T (row vector since I == 1)
    whh_ref  : (H, H)   W_hh^T
    bias_ref : (1, H)   b_ih + b_hh (folded)
    wout_ref : (1, H)   output projection weights (row)
    bout_ref : (1, 1)   output projection bias
    y_ref    : (B, T)   per-timestep outputs (squeezed)
    hT_ref   : (B, H)   final hidden state
    """
    B, T = x_ref.shape

    x = x_ref[...]            # (B, T)
    h = h0_ref[...]           # (B, H)  -- carried in vregs, never round-trips VMEM
    w_row = wih_ref[...]      # (1, H)
    bias = bias_ref[...]      # (1, H)
    whh_t = whh_ref[...]      # (H, H)
    wout_row = wout_ref[...]  # (1, H)
    bout = bout_ref[...]      # (1, 1)

    # Hoisted input projection: xp[t] = x_t * W_ih^T + (b_ih + b_hh).
    # (Pure broadcast multiply on the VPU; no dependence on the recurrence.)
    xp = [x[:, t:t + 1] * w_row + bias for t in range(T)]   # each (B, H)

    # Serial recurrence, fully unrolled (T is small & static) so the LLO
    # scheduler can overlap MXU pushes, EUP tanh and VPU adds across steps.
    hs = []
    for t in range(T):
        h = jnp.tanh(xp[t] +
                     jnp.dot(h, whh_t, preferred_element_type=jnp.float32))
        hs.append(h)

    hT_ref[...] = h

    # Output projection, batched after the recurrence (off the critical path):
    # y[b, t] = sum_h h_t[b, h] * W_out[0, h] + b_out.  VPU mul + XLU reduce;
    # the (B, T) output block is written back to HBM exactly once.
    for t in range(T):
        y_ref[:, t:t + 1] = (jnp.sum(hs[t] * wout_row, axis=-1, keepdims=True)
                             + bout)


def rnn_forward(x, h_state, params):
    """x: (B, T, 1) float32; h_state: (1, B, H) or None.
    Returns (outs: (B, T, 1), h_state: (1, B, H))."""
    B, T, I = x.shape
    assert I == INPUT_SIZE == 1
    H = HIDDEN

    if h_state is None:
        h0 = jnp.zeros((B, H), jnp.float32)
    else:
        h0 = h_state[0]

    # Layout glue (cheap, one-time, no transposes of x/y):
    x2d = x.reshape(B, T)                               # drop trailing I == 1
    wih_row = params["w_ih"].reshape(1, H)              # (H,1) -> (1,H) == W_ih^T
    whh_t = params["w_hh"].T                            # (H, H)
    bias = (params["b_ih"] + params["b_hh"]).reshape(1, H)
    wout_row = params["w_out"].reshape(1, H)            # (1, H)
    bout = params["b_out"].reshape(1, 1)

    vmem_specs = [pl.BlockSpec(memory_space=pltpu.MemorySpace.VMEM)
                  for _ in range(7)]

    y2d, h_final = pl.pallas_call(
        _rnn_kernel,
        out_shape=(jax.ShapeDtypeStruct((B, T), jnp.float32),
                   jax.ShapeDtypeStruct((B, H), jnp.float32)),
        in_specs=vmem_specs,
        out_specs=(pl.BlockSpec(memory_space=pltpu.MemorySpace.VMEM),
                   pl.BlockSpec(memory_space=pltpu.MemorySpace.VMEM)),
    )(x2d, h0, wih_row, whh_t, bias, wout_row, bout)

    outs = y2d[..., None]                               # (B, T, 1)
    return outs, h_final[None]                          # (1, B, H)


def _reference(x, h_state, params):
    """Pure-JAX reference mirroring torch.nn.RNN + Linear forward."""
    B, T, I = x.shape
    H = HIDDEN
    h = jnp.zeros((B, H), jnp.float32) if h_state is None else h_state[0]
    ys = []
    for t in range(T):
        h = jnp.tanh(x[:, t, :] @ params["w_ih"].T + params["b_ih"]
                     + h @ params["w_hh"].T + params["b_hh"])
        ys.append(h @ params["w_out"].T + params["b_out"])
    return jnp.stack(ys, axis=1), h[None]


def init_params(key):
    H, I = HIDDEN, INPUT_SIZE
    k = jax.random.split(key, 6)
    s = 1.0 / jnp.sqrt(H)
    return {
        "w_ih": jax.random.uniform(k[0], (H, I), jnp.float32, -s, s),
        "w_hh": jax.random.uniform(k[1], (H, H), jnp.float32, -s, s),
        "b_ih": jax.random.uniform(k[2], (H,), jnp.float32, -s, s),
        "b_hh": jax.random.uniform(k[3], (H,), jnp.float32, -s, s),
        "w_out": jax.random.uniform(k[4], (1, H), jnp.float32, -s, s),
        "b_out": jax.random.uniform(k[5], (1,), jnp.float32, -s, s),
    }


if __name__ == "__main__":
    key = jax.random.PRNGKey(0)
    kx, kh, kp = jax.random.split(key, 3)

    B, T, I = 2, 8, INPUT_SIZE
    x = jax.random.normal(kx, (B, T, I), jnp.float32)
    h_state = jax.random.normal(kh, (1, B, HIDDEN), jnp.float32)
    params = init_params(kp)

    outs, h_out = rnn_forward(x, h_state, params)
    outs = jax.block_until_ready(outs)
    h_out = jax.block_until_ready(h_out)

    outs_ref, h_ref = _reference(x, h_state, params)
    assert outs.shape == (B, T, 1) and h_out.shape == (1, B, HIDDEN)
    assert jnp.allclose(outs, outs_ref, atol=1e-5, rtol=1e-5)
    assert jnp.allclose(h_out, h_ref, atol=1e-5, rtol=1e-5)

    print("KERNEL_OK")
</pallas_src>

<mosaic_0001>
module attributes {stable_mosaic.version = 11 : i64} {
  func.func @_rnn_kernel(%arg0: memref<2x8xf32, #tpu.memory_space<vmem>>, %arg1: memref<2x32xf32, #tpu.memory_space<vmem>>, %arg2: memref<1x32xf32, #tpu.memory_space<vmem>>, %arg3: memref<32x32xf32, #tpu.memory_space<vmem>>, %arg4: memref<1x32xf32, #tpu.memory_space<vmem>>, %arg5: memref<1x32xf32, #tpu.memory_space<vmem>>, %arg6: memref<1x1xf32, #tpu.memory_space<vmem>>, %arg7: memref<2x8xf32, #tpu.memory_space<vmem>>, %arg8: memref<2x32xf32, #tpu.memory_space<vmem>>) attributes {dimension_semantics = [], scalar_prefetch = 0 : i64, scratch_operands = 0 : i64, tpu.core_type = #tpu.core_type<tc>} {
    %c0 = arith.constant 0 : index
    %c0_0 = arith.constant 0 : index
    %0 = vector.load %arg0[%c0, %c0_0] : memref<2x8xf32, #tpu.memory_space<vmem>>, vector<2x8xf32>
    %c0_1 = arith.constant 0 : index
    %c0_2 = arith.constant 0 : index
    %1 = vector.load %arg1[%c0_1, %c0_2] : memref<2x32xf32, #tpu.memory_space<vmem>>, vector<2x32xf32>
    %c0_3 = arith.constant 0 : index
    %c0_4 = arith.constant 0 : index
    %2 = vector.load %arg2[%c0_3, %c0_4] : memref<1x32xf32, #tpu.memory_space<vmem>>, vector<1x32xf32>
    %c0_5 = arith.constant 0 : index
    %c0_6 = arith.constant 0 : index
    %3 = vector.load %arg4[%c0_5, %c0_6] : memref<1x32xf32, #tpu.memory_space<vmem>>, vector<1x32xf32>
    %c0_7 = arith.constant 0 : index
    %c0_8 = arith.constant 0 : index
    %4 = vector.load %arg3[%c0_7, %c0_8] : memref<32x32xf32, #tpu.memory_space<vmem>>, vector<32x32xf32>
    %c0_9 = arith.constant 0 : index
    %c0_10 = arith.constant 0 : index
    %5 = vector.load %arg5[%c0_9, %c0_10] : memref<1x32xf32, #tpu.memory_space<vmem>>, vector<1x32xf32>
    %c0_11 = arith.constant 0 : index
    %c0_12 = arith.constant 0 : index
    %6 = vector.load %arg6[%c0_11, %c0_12] : memref<1x1xf32, #tpu.memory_space<vmem>>, vector<1x1xf32>
    %7 = vector.extract_strided_slice %0 {offsets = [0, 0], sizes = [2, 1], strides = [1, 1]} : vector<2x8xf32> to vector<2x1xf32>
    %8 = vector.broadcast %7 : vector<2x1xf32> to vector<2x32xf32>
    %9 = vector.broadcast %2 : vector<1x32xf32> to vector<2x32xf32>
    %10 = arith.mulf %8, %9 : vector<2x32xf32>
    %11 = vector.broadcast %3 : vector<1x32xf32> to vector<2x32xf32>
    %12 = arith.addf %10, %11 : vector<2x32xf32>
    %13 = vector.extract_strided_slice %0 {offsets = [0, 1], sizes = [2, 1], strides = [1, 1]} : vector<2x8xf32> to vector<2x1xf32>
    %14 = vector.broadcast %13 : vector<2x1xf32> to vector<2x32xf32>
    %15 = vector.broadcast %2 : vector<1x32xf32> to vector<2x32xf32>
    %16 = arith.mulf %14, %15 : vector<2x32xf32>
    %17 = vector.broadcast %3 : vector<1x32xf32> to vector<2x32xf32>
    %18 = arith.addf %16, %17 : vector<2x32xf32>
    %19 = vector.extract_strided_slice %0 {offsets = [0, 2], sizes = [2, 1], strides = [1, 1]} : vector<2x8xf32> to vector<2x1xf32>
    %20 = vector.broadcast %19 : vector<2x1xf32> to vector<2x32xf32>
    %21 = vector.broadcast %2 : vector<1x32xf32> to vector<2x32xf32>
    %22 = arith.mulf %20, %21 : vector<2x32xf32>
    %23 = vector.broadcast %3 : vector<1x32xf32> to vector<2x32xf32>
    %24 = arith.addf %22, %23 : vector<2x32xf32>
    %25 = vector.extract_strided_slice %0 {offsets = [0, 3], sizes = [2, 1], strides = [1, 1]} : vector<2x8xf32> to vector<2x1xf32>
    %26 = vector.broadcast %25 : vector<2x1xf32> to vector<2x32xf32>
    %27 = vector.broadcast %2 : vector<1x32xf32> to vector<2x32xf32>
    %28 = arith.mulf %26, %27 : vector<2x32xf32>
    %29 = vector.broadcast %3 : vector<1x32xf32> to vector<2x32xf32>
    %30 = arith.addf %28, %29 : vector<2x32xf32>
    %31 = vector.extract_strided_slice %0 {offsets = [0, 4], sizes = [2, 1], strides = [1, 1]} : vector<2x8xf32> to vector<2x1xf32>
    %32 = vector.broadcast %31 : vector<2x1xf32> to vector<2x32xf32>
    %33 = vector.broadcast %2 : vector<1x32xf32> to vector<2x32xf32>
    %34 = arith.mulf %32, %33 : vector<2x32xf32>
    %35 = vector.broadcast %3 : vector<1x32xf32> to vector<2x32xf32>
    %36 = arith.addf %34, %35 : vector<2x32xf32>
    %37 = vector.extract_strided_slice %0 {offsets = [0, 5], sizes = [2, 1], strides = [1, 1]} : vector<2x8xf32> to vector<2x1xf32>
    %38 = vector.broadcast %37 : vector<2x1xf32> to vector<2x32xf32>
    %39 = vector.broadcast %2 : vector<1x32xf32> to vector<2x32xf32>
    %40 = arith.mulf %38, %39 : vector<2x32xf32>
    %41 = vector.broadcast %3 : vector<1x32xf32> to vector<2x32xf32>
    %42 = arith.addf %40, %41 : vector<2x32xf32>
    %43 = vector.extract_strided_slice %0 {offsets = [0, 6], sizes = [2, 1], strides = [1, 1]} : vector<2x8xf32> to vector<2x1xf32>
    %44 = vector.broadcast %43 : vector<2x1xf32> to vector<2x32xf32>
    %45 = vector.broadcast %2 : vector<1x32xf32> to vector<2x32xf32>
    %46 = arith.mulf %44, %45 : vector<2x32xf32>
    %47 = vector.broadcast %3 : vector<1x32xf32> to vector<2x32xf32>
    %48 = arith.addf %46, %47 : vector<2x32xf32>
    %49 = vector.extract_strided_slice %0 {offsets = [0, 7], sizes = [2, 1], strides = [1, 1]} : vector<2x8xf32> to vector<2x1xf32>
    %50 = vector.broadcast %49 : vector<2x1xf32> to vector<2x32xf32>
    %51 = vector.broadcast %2 : vector<1x32xf32> to vector<2x32xf32>
    %52 = arith.mulf %50, %51 : vector<2x32xf32>
    %53 = vector.broadcast %3 : vector<1x32xf32> to vector<2x32xf32>
    %54 = arith.addf %52, %53 : vector<2x32xf32>
    %cst = arith.constant dense<0.000000e+00> : vector<2x32xf32>
    %55 = tpu.matmul %1, %4, %cst {dimension_numbers = #tpu.dot_dimension_numbers<[1], [0], [0], [1], [0, 0, 1, 1], [], []>} : vector<2x32xf32>, vector<32x32xf32>, vector<2x32xf32> -> vector<2x32xf32>
    %56 = arith.addf %12, %55 : vector<2x32xf32>
    %57 = math.tanh %56 : vector<2x32xf32>
    %cst_13 = arith.constant dense<0.000000e+00> : vector<2x32xf32>
    %58 = tpu.matmul %57, %4, %cst_13 {dimension_numbers = #tpu.dot_dimension_numbers<[1], [0], [0], [1], [0, 0, 1, 1], [], []>} : vector<2x32xf32>, vector<32x32xf32>, vector<2x32xf32> -> vector<2x32xf32>
    %59 = arith.addf %18, %58 : vector<2x32xf32>
    %60 = math.tanh %59 : vector<2x32xf32>
    %cst_14 = arith.constant dense<0.000000e+00> : vector<2x32xf32>
    %61 = tpu.matmul %60, %4, %cst_14 {dimension_numbers = #tpu.dot_dimension_numbers<[1], [0], [0], [1], [0, 0, 1, 1], [], []>} : vector<2x32xf32>, vector<32x32xf32>, vector<2x32xf32> -> vector<2x32xf32>
    %62 = arith.addf %24, %61 : vector<2x32xf32>
    %63 = math.tanh %62 : vector<2x32xf32>
    %cst_15 = arith.constant dense<0.000000e+00> : vector<2x32xf32>
    %64 = tpu.matmul %63, %4, %cst_15 {dimension_numbers = #tpu.dot_dimension_numbers<[1], [0], [0], [1], [0, 0, 1, 1], [], []>} : vector<2x32xf32>, vector<32x32xf32>, vector<2x32xf32> -> vector<2x32xf32>
    %65 = arith.addf %30, %64 : vector<2x32xf32>
    %66 = math.tanh %65 : vector<2x32xf32>
    %cst_16 = arith.constant dense<0.000000e+00> : vector<2x32xf32>
    %67 = tpu.matmul %66, %4, %cst_16 {dimension_numbers = #tpu.dot_dimension_numbers<[1], [0], [0], [1], [0, 0, 1, 1], [], []>} : vector<2x32xf32>, vector<32x32xf32>, vector<2x32xf32> -> vector<2x32xf32>
    %68 = arith.addf %36, %67 : vector<2x32xf32>
    %69 = math.tanh %68 : vector<2x32xf32>
    %cst_17 = arith.constant dense<0.000000e+00> : vector<2x32xf32>
    %70 = tpu.matmul %69, %4, %cst_17 {dimension_numbers = #tpu.dot_dimension_numbers<[1], [0], [0], [1], [0, 0, 1, 1], [], []>} : vector<2x32xf32>, vector<32x32xf32>, vector<2x32xf32> -> vector<2x32xf32>
    %71 = arith.addf %42, %70 : vector<2x32xf32>
    %72 = math.tanh %71 : vector<2x32xf32>
    %cst_18 = arith.constant dense<0.000000e+00> : vector<2x32xf32>
    %73 = tpu.matmul %72, %4, %cst_18 {dimension_numbers = #tpu.dot_dimension_numbers<[1], [0], [0], [1], [0, 0, 1, 1], [], []>} : vector<2x32xf32>, vector<32x32xf32>, vector<2x32xf32> -> vector<2x32xf32>
    %74 = arith.addf %48, %73 : vector<2x32xf32>
    %75 = math.tanh %74 : vector<2x32xf32>
    %cst_19 = arith.constant dense<0.000000e+00> : vector<2x32xf32>
    %76 = tpu.matmul %75, %4, %cst_19 {dimension_numbers = #tpu.dot_dimension_numbers<[1], [0], [0], [1], [0, 0, 1, 1], [], []>} : vector<2x32xf32>, vector<32x32xf32>, vector<2x32xf32> -> vector<2x32xf32>
    %77 = arith.addf %54, %76 : vector<2x32xf32>
    %78 = math.tanh %77 : vector<2x32xf32>
    %c0_20 = arith.constant 0 : index
    %c0_21 = arith.constant 0 : index
    %79 = vector.load %arg8[%c0_20, %c0_21] : memref<2x32xf32, #tpu.memory_space<vmem>>, vector<2x32xf32>
    tpu.vector_store %arg8[%c0_20, %c0_21], %78 {strides = array<i32>} : memref<2x32xf32, #tpu.memory_space<vmem>>, vector<2x32xf32>,
    %80 = vector.broadcast %5 : vector<1x32xf32> to vector<2x32xf32>
    %81 = arith.mulf %57, %80 : vector<2x32xf32>
    %cst_22 = arith.constant dense<0.000000e+00> : vector<2xf32>
    %82 = vector.multi_reduction <add>, %81, %cst_22 [1] : vector<2x32xf32> to vector<2xf32>
    %83 = vector.shape_cast %82 : vector<2xf32> to vector<2x1xf32>
    %84 = vector.broadcast %6 : vector<1x1xf32> to vector<2x1xf32>
    %85 = arith.addf %83, %84 : vector<2x1xf32>
    %c0_23 = arith.constant 0 : index
    %c0_24 = arith.constant 0 : index
    %86 = vector.load %arg7[%c0_23, %c0_24] : memref<2x8xf32, #tpu.memory_space<vmem>>, vector<2x1xf32>
    tpu.vector_store %arg7[%c0_23, %c0_24], %85 {strides = array<i32>} : memref<2x8xf32, #tpu.memory_space<vmem>>, vector<2x1xf32>,
    %87 = vector.broadcast %5 : vector<1x32xf32> to vector<2x32xf32>
    %88 = arith.mulf %60, %87 : vector<2x32xf32>
    %cst_25 = arith.constant dense<0.000000e+00> : vector<2xf32>
    %89 = vector.multi_reduction <add>, %88, %cst_25 [1] : vector<2x32xf32> to vector<2xf32>
    %90 = vector.shape_cast %89 : vector<2xf32> to vector<2x1xf32>
    %91 = vector.broadcast %6 : vector<1x1xf32> to vector<2x1xf32>
    %92 = arith.addf %90, %91 : vector<2x1xf32>
    %c0_26 = arith.constant 0 : index
    %c1 = arith.constant 1 : index
    %93 = vector.load %arg7[%c0_26, %c1] : memref<2x8xf32, #tpu.memory_space<vmem>>, vector<2x1xf32>
    tpu.vector_store %arg7[%c0_26, %c1], %92 {strides = array<i32>} : memref<2x8xf32, #tpu.memory_space<vmem>>, vector<2x1xf32>,
    %94 = vector.broadcast %5 : vector<1x32xf32> to vector<2x32xf32>
    %95 = arith.mulf %63, %94 : vector<2x32xf32>
    %cst_27 = arith.constant dense<0.000000e+00> : vector<2xf32>
    %96 = vector.multi_reduction <add>, %95, %cst_27 [1] : vector<2x32xf32> to vector<2xf32>
    %97 = vector.shape_cast %96 : vector<2xf32> to vector<2x1xf32>
    %98 = vector.broadcast %6 : vector<1x1xf32> to vector<2x1xf32>
    %99 = arith.addf %97, %98 : vector<2x1xf32>
    %c0_28 = arith.constant 0 : index
    %c2 = arith.constant 2 : index
    %100 = vector.load %arg7[%c0_28, %c2] : memref<2x8xf32, #tpu.memory_space<vmem>>, vector<2x1xf32>
    tpu.vector_store %arg7[%c0_28, %c2], %99 {strides = array<i32>} : memref<2x8xf32, #tpu.memory_space<vmem>>, vector<2x1xf32>,
    %101 = vector.broadcast %5 : vector<1x32xf32> to vector<2x32xf32>
    %102 = arith.mulf %66, %101 : vector<2x32xf32>
    %cst_29 = arith.constant dense<0.000000e+00> : vector<2xf32>
    %103 = vector.multi_reduction <add>, %102, %cst_29 [1] : vector<2x32xf32> to vector<2xf32>
    %104 = vector.shape_cast %103 : vector<2xf32> to vector<2x1xf32>
    %105 = vector.broadcast %6 : vector<1x1xf32> to vector<2x1xf32>
    %106 = arith.addf %104, %105 : vector<2x1xf32>
    %c0_30 = arith.constant 0 : index
    %c3 = arith.constant 3 : index
    %107 = vector.load %arg7[%c0_30, %c3] : memref<2x8xf32, #tpu.memory_space<vmem>>, vector<2x1xf32>
    tpu.vector_store %arg7[%c0_30, %c3], %106 {strides = array<i32>} : memref<2x8xf32, #tpu.memory_space<vmem>>, vector<2x1xf32>,
    %108 = vector.broadcast %5 : vector<1x32xf32> to vector<2x32xf32>
    %109 = arith.mulf %69, %108 : vector<2x32xf32>
    %cst_31 = arith.constant dense<0.000000e+00> : vector<2xf32>
    %110 = vector.multi_reduction <add>, %109, %cst_31 [1] : vector<2x32xf32> to vector<2xf32>
    %111 = vector.shape_cast %110 : vector<2xf32> to vector<2x1xf32>
    %112 = vector.broadcast %6 : vector<1x1xf32> to vector<2x1xf32>
    %113 = arith.addf %111, %112 : vector<2x1xf32>
    %c0_32 = arith.constant 0 : index
    %c4 = arith.constant 4 : index
    %114 = vector.load %arg7[%c0_32, %c4] : memref<2x8xf32, #tpu.memory_space<vmem>>, vector<2x1xf32>
    tpu.vector_store %arg7[%c0_32, %c4], %113 {strides = array<i32>} : memref<2x8xf32, #tpu.memory_space<vmem>>, vector<2x1xf32>,
    %115 = vector.broadcast %5 : vector<1x32xf32> to vector<2x32xf32>
    %116 = arith.mulf %72, %115 : vector<2x32xf32>
    %cst_33 = arith.constant dense<0.000000e+00> : vector<2xf32>
    %117 = vector.multi_reduction <add>, %116, %cst_33 [1] : vector<2x32xf32> to vector<2xf32>
    %118 = vector.shape_cast %117 : vector<2xf32> to vector<2x1xf32>
    %119 = vector.broadcast %6 : vector<1x1xf32> to vector<2x1xf32>
    %120 = arith.addf %118, %119 : vector<2x1xf32>
    %c0_34 = arith.constant 0 : index
    %c5 = arith.constant 5 : index
    %121 = vector.load %arg7[%c0_34, %c5] : memref<2x8xf32, #tpu.memory_space<vmem>>, vector<2x1xf32>
    tpu.vector_store %arg7[%c0_34, %c5], %120 {strides = array<i32>} : memref<2x8xf32, #tpu.memory_space<vmem>>, vector<2x1xf32>,
    %122 = vector.broadcast %5 : vector<1x32xf32> to vector<2x32xf32>
    %123 = arith.mulf %75, %122 : vector<2x32xf32>
    %cst_35 = arith.constant dense<0.000000e+00> : vector<2xf32>
    %124 = vector.multi_reduction <add>, %123, %cst_35 [1] : vector<2x32xf32> to vector<2xf32>
    %125 = vector.shape_cast %124 : vector<2xf32> to vector<2x1xf32>
    %126 = vector.broadcast %6 : vector<1x1xf32> to vector<2x1xf32>
    %127 = arith.addf %125, %126 : vector<2x1xf32>
    %c0_36 = arith.constant 0 : index
    %c6 = arith.constant 6 : index
    %128 = vector.load %arg7[%c0_36, %c6] : memref<2x8xf32, #tpu.memory_space<vmem>>, vector<2x1xf32>
    tpu.vector_store %arg7[%c0_36, %c6], %127 {strides = array<i32>} : memref<2x8xf32, #tpu.memory_space<vmem>>, vector<2x1xf32>,
    %129 = vector.broadcast %5 : vector<1x32xf32> to vector<2x32xf32>
    %130 = arith.mulf %78, %129 : vector<2x32xf32>
    %cst_37 = arith.constant dense<0.000000e+00> : vector<2xf32>
    %131 = vector.multi_reduction <add>, %130, %cst_37 [1] : vector<2x32xf32> to vector<2xf32>
    %132 = vector.shape_cast %131 : vector<2xf32> to vector<2x1xf32>
    %133 = vector.broadcast %6 : vector<1x1xf32> to vector<2x1xf32>
    %134 = arith.addf %132, %133 : vector<2x1xf32>
    %c0_38 = arith.constant 0 : index
    %c7 = arith.constant 7 : index
    %135 = vector.load %arg7[%c0_38, %c7] : memref<2x8xf32, #tpu.memory_space<vmem>>, vector<2x1xf32>
    tpu.vector_store %arg7[%c0_38, %c7], %134 {strides = array<i32>} : memref<2x8xf32, #tpu.memory_space<vmem>>, vector<2x1xf32>,
    return
  }
}

</mosaic_0001>

<llo_original>
// kernel: tpu_custom_call.1
$region0: #{tpu_custom_call.1}
  #allocation0 [shape = 'u32[]', space=smem, size = 0x4, offset = 0x4, fixed_abs, tag = 'smem constant byte address 0x4 - core index']
  #allocation1 [shape = 'u32[72,128]{1,0:T(1,128)}', space=vmem, size = 0x9000, scoped, tag = 'internal scratch']
  #allocation2 [shape = 'f32[1,1]{1,0:T(1,128)S(1)}', space=vmem, size = 0x200, scoped, tag = 'scoped memory for tpu_custom_call.1']
  %s0 = inlined_call_operand.vmem [shape: f32[2,8], index: 0, kind: input, shape index: {}]
  %s1 = inlined_call_operand.hbm [shape: f32[2,32], index: 1, kind: input, shape index: {}]
  %s2 = inlined_call_operand.vmem [shape: f32[1,32], index: 2, kind: input, shape index: {}]
  %s3 = inlined_call_operand.hbm [shape: f32[32,32], index: 3, kind: input, shape index: {}]
  %s4 = inlined_call_operand.vmem [shape: f32[1,32], index: 4, kind: input, shape index: {}]
  %s5 = inlined_call_operand.vmem [shape: f32[1,32], index: 5, kind: input, shape index: {}]
  %s6 = inlined_call_operand.<no memory space> [shape: f32[1,1], index: 6, kind: input, shape index: {}]
  %s7 = inlined_call_operand.hbm [shape: f32[2,8], index: 7, kind: output, shape index: {0}]
  %s8 = inlined_call_operand.hbm [shape: f32[2,32], index: 8, kind: output, shape index: {1}]
  %9 = xla_tuple %s7, %s8
  %s10 = sld [smem:[#allocation0]]
  $region54: #{tpu_custom_call.1} parent=0
    _
  %s12 = ssub.s32 1, %s10
  %s13 = scalar_select 0, %s12, %s10
  %v14 = vstv %s6
  %15 = vst [vmem:[#allocation2] sm:$0x1] %v14
  $region1: #{tpu_custom_call.1} parent=0
    #allocation3 [shape = 'u8[1024]{0}', space=vmem, size = 0x400, scoped, tag = 'input window, operand 1, single buffered']
    #allocation4 [shape = 's32[1]{0}', space=sflag, size = 0x4, scoped, tag = 'scoped memory for tpu_custom_call.1']
    #allocation5 [shape = 's32[1]{0}', space=sflag, size = 0x4, scoped, tag = 'scoped memory for tpu_custom_call.1']
    #allocation6 [shape = 'u8[16384]{0}', space=vmem, size = 0x4000, scoped, tag = 'input window, operand 3, single buffered']
    #allocation7 [shape = 's32[1]{0}', space=sflag, size = 0x4, scoped, tag = 'scoped memory for tpu_custom_call.1']
    #allocation8 [shape = 'u8[1024]{0}', space=vmem, size = 0x400, scoped, tag = 'output window, operand 0, single buffered']
    #allocation9 [shape = 'u8[1024]{0}', space=vmem, size = 0x400, scoped, tag = 'output window, operand 1, single buffered']
    #allocation10 [shape = 's32[1]{0}', space=sflag, size = 0x4, scoped, tag = 'scoped memory for tpu_custom_call.1']
    %16 = vsyncpa [#allocation4], 0
    %17 = vsyncpa [#allocation7], 0
    %18 = vsyncpa [#allocation5], 0
    %19 = vsyncpa [#allocation10], 0
    // Predicated region
    $region2: #{tpu_custom_call.1} parent=1 // pred_check
      _
    $region3: #{tpu_custom_call.1} parent=1 // pred_check_branch
      %21 = sbr.rel (0) target = $region5
    $region4: #{tpu_custom_call.1} parent=1 // pred_region
      _
    $region5: #{tpu_custom_call.1} parent=1 // pred_fallthru
      _
    // Predicated region
    $region6: #{tpu_custom_call.1} parent=1 // pred_check
      _
    $region7: #{tpu_custom_call.1} parent=1 // pred_check_branch
      %23 = sbr.rel (0) target = $region9
    $region8: #{tpu_custom_call.1} parent=1 // pred_region
      %25 = vsyncadd [#allocation4], 0
      %s27 = sshll.u32 %s1, 4
      %s28 = int_to_ptr.hbm [resolvable:$true] %s27
      %s29 = sshll.u32 [#allocation3], 4
      %s30 = int_to_ptr.vmem [resolvable:$true] %s29
      %32 = dma.hbm_to_vmem [thread:$0]  %s28, 32, %s30, [#allocation4]
    $region9: #{tpu_custom_call.1} parent=1 // pred_fallthru
      _
    // Predicated region
    $region10: #{tpu_custom_call.1} parent=1 // pred_check
      _
    $region11: #{tpu_custom_call.1} parent=1 // pred_check_branch
      %34 = sbr.rel (0) target = $region13
    $region12: #{tpu_custom_call.1} parent=1 // pred_region
      _
    $region13: #{tpu_custom_call.1} parent=1 // pred_fallthru
      _
    // Predicated region
    $region14: #{tpu_custom_call.1} parent=1 // pred_check
      _
    $region15: #{tpu_custom_call.1} parent=1 // pred_check_branch
      %36 = sbr.rel (0) target = $region17
    $region16: #{tpu_custom_call.1} parent=1 // pred_region
      %38 = vsyncadd [#allocation7], 0
      %s39 = sshll.u32 %s3, 4
      %s40 = int_to_ptr.hbm [resolvable:$true] %s39
      %s41 = sshll.u32 [#allocation6], 4
      %s42 = int_to_ptr.vmem [resolvable:$true] %s41
      %47 = dma.hbm_to_vmem [thread:$0]  %s40, 512, %s42, [#allocation7], 128, 128, 8
    $region17: #{tpu_custom_call.1} parent=1 // pred_fallthru
      _
    // Predicated region
    $region18: #{tpu_custom_call.1} parent=1 // pred_check
      _
    $region19: #{tpu_custom_call.1} parent=1 // pred_check_branch
      %49 = sbr.rel (0) target = $region21
    $region20: #{tpu_custom_call.1} parent=1 // pred_region
      _
    $region21: #{tpu_custom_call.1} parent=1 // pred_fallthru
      _
    // Predicated region
    $region22: #{tpu_custom_call.1} parent=1 // pred_check
      _
    $region23: #{tpu_custom_call.1} parent=1 // pred_check_branch
      %51 = sbr.rel (0) target = $region25
    $region24: #{tpu_custom_call.1} parent=1 // pred_region
      _
    $region25: #{tpu_custom_call.1} parent=1 // pred_fallthru
      _
    // Predicated region
    $region26: #{tpu_custom_call.1} parent=1 // pred_check
      _
    $region27: #{tpu_custom_call.1} parent=1 // pred_check_branch
      %53 = sbr.rel (0) target = $region29
    $region28: #{tpu_custom_call.1} parent=1 // pred_region
      _
    $region29: #{tpu_custom_call.1} parent=1 // pred_fallthru
      _
    // Predicated region
    $region30: #{tpu_custom_call.1} parent=1 // pred_check
      _
    $region31: #{tpu_custom_call.1} parent=1 // pred_check_branch
      %55 = sbr.rel (0) target = $region33
    $region32: #{tpu_custom_call.1} parent=1 // pred_region
      %57 = dma.done [#allocation4], 32
    $region33: #{tpu_custom_call.1} parent=1 // pred_fallthru
      _
    // Predicated region
    $region34: #{tpu_custom_call.1} parent=1 // pred_check
      _
    $region35: #{tpu_custom_call.1} parent=1 // pred_check_branch
      %59 = sbr.rel (0) target = $region37
    $region36: #{tpu_custom_call.1} parent=1 // pred_region
      %61 = dma.done [#allocation7], 512
    $region37: #{tpu_custom_call.1} parent=1 // pred_fallthru
      _
    %v62 = vld [vmem:[%s0] sm:$0x3]
    %v63 = vld [vmem:[#allocation3] sm:$0x3]
    %v64 = vld [vmem:[%s2] sm:$0x1]
    %v65 = vld [vmem:[%s4] sm:$0x1]
    %v66 = vld [vmem:[#allocation6] sm:$0xff]
    %v67 = vld [vmem:[#allocation6 + $0x8] sm:$0xff]
    %v68 = vld [vmem:[#allocation6 + $0x10] sm:$0xff]
    %v69 = vld [vmem:[#allocation6 + $0x18] sm:$0xff]
    %v70 = vld [vmem:[%s5] sm:$0x1]
    %v71 = vld [vmem:[#allocation2] sm:$0x1]
    %73 = vset.pattern.permute.xlu0 0
    %74 = vperm.xlu0 %73, %v62
    %v75 = vpop.permute.xlu0 %74
    %v78 = vperm.slane %v64, 0
    %v80 = vmul.f32 %v75, %v78
    %v82 = vperm.slane %v65, 0
    %v84 = vadd.f32 %v80, %v82
    %85 = vset.pattern.permute.xlu0 1
    %86 = vperm.xlu0 %85, %v62
    %v87 = vpop.permute.xlu0 %86
    %v89 = vmul.f32 %v87, %v78
    %v90 = vadd.f32 %v89, %v82
    %91 = vset.pattern.permute.xlu0 2
    %92 = vperm.xlu0 %91, %v62
    %v93 = vpop.permute.xlu0 %92
    %v95 = vmul.f32 %v93, %v78
    %v96 = vadd.f32 %v95, %v82
    %97 = vset.pattern.permute.xlu0 3
    %98 = vperm.xlu0 %97, %v62
    %v99 = vpop.permute.xlu0 %98
    %v101 = vmul.f32 %v99, %v78
    %v102 = vadd.f32 %v101, %v82
    %103 = vset.pattern.permute.xlu0 4
    %104 = vperm.xlu0 %103, %v62
    %v105 = vpop.permute.xlu0 %104
    %v107 = vmul.f32 %v105, %v78
    %v108 = vadd.f32 %v107, %v82
    %109 = vset.pattern.permute.xlu0 5
    %110 = vperm.xlu0 %109, %v62
    %v111 = vpop.permute.xlu0 %110
    %v113 = vmul.f32 %v111, %v78
    %v114 = vadd.f32 %v113, %v82
    %115 = vset.pattern.permute.xlu0 6
    %116 = vperm.xlu0 %115, %v62
    %v117 = vpop.permute.xlu0 %116
    %v119 = vmul.f32 %v117, %v78
    %v120 = vadd.f32 %v119, %v82
    %121 = vset.pattern.permute.xlu0 7
    %122 = vperm.xlu0 %121, %v62
    %v123 = vpop.permute.xlu0 %122
    %v125 = vmul.f32 %v123, %v78
    %v126 = vadd.f32 %v125, %v82
    %vm127 = vcmask 261120
    %v129 = vsel %vm127, %v63, 0
    %131 = vmatpush.msra.mxu0 0.0
    %132 = vmatpush.msra.mxu0 0.0
    %133 = vmatpush.msra.mxu0 0.0
    %134 = vmatpush.msra.mxu0 0.0
    %135 = vmatpush.msra.mxu0 0.0
    %136 = vmatpush.msra.mxu0 0.0
    %137 = vmatpush.msra.mxu0 0.0
    %138 = vmatpush.msra.mxu0 0.0
    %139 = vmatpush.msra.mxu0 0.0
    %140 = vmatpush.msra.mxu0 0.0
    %141 = vmatpush.msra.mxu0 0.0
    %142 = vmatpush.msra.mxu0 0.0
    %143 = vmatpush.msra.mxu0 %v69
    %144 = vmatpush.msra.mxu0 %v68
    %145 = vmatpush.msra.mxu0 %v67
    %146 = vmatpush.msra.mxu0 %v66
    %147 = vmatmul.f32.gmra.mxu0 %v129
    %v148 = vpop.f32.mrf.mxu0
    %v149 = vadd.f32 0.0, %v148
    %150 = vdwg.mxu0
    %v151 = vadd.f32 %v84, %v149
    %v152 = vtanh.pop %v151
    %v154 = vsel %vm127, %v152, 0
    %156 = vmatpush.msra.mxu0 0.0
    %157 = vmatpush.msra.mxu0 0.0
    %158 = vmatpush.msra.mxu0 0.0
    %159 = vmatpush.msra.mxu0 0.0
    %160 = vmatpush.msra.mxu0 0.0
    %161 = vmatpush.msra.mxu0 0.0
    %162 = vmatpush.msra.mxu0 0.0
    %163 = vmatpush.msra.mxu0 0.0
    %164 = vmatpush.msra.mxu0 0.0
    %165 = vmatpush.msra.mxu0 0.0
    %166 = vmatpush.msra.mxu0 0.0
    %167 = vmatpush.msra.mxu0 0.0
    %168 = vmatpush.msra.mxu0 %v69
    %169 = vmatpush.msra.mxu0 %v68
    %170 = vmatpush.msra.mxu0 %v67
    %171 = vmatpush.msra.mxu0 %v66
    %172 = vmatmul.f32.gmra.mxu0 %v154
    %v173 = vpop.f32.mrf.mxu0
    %v174 = vadd.f32 0.0, %v173
    %175 = vdwg.mxu0
    %v176 = vadd.f32 %v90, %v174
    %v177 = vtanh.pop %v176
    %v179 = vsel %vm127, %v177, 0
    %181 = vmatpush.msra.mxu0 0.0
    %182 = vmatpush.msra.mxu0 0.0
    %183 = vmatpush.msra.mxu0 0.0
    %184 = vmatpush.msra.mxu0 0.0
    %185 = vmatpush.msra.mxu0 0.0
    %186 = vmatpush.msra.mxu0 0.0
    %187 = vmatpush.msra.mxu0 0.0
    %188 = vmatpush.msra.mxu0 0.0
    %189 = vmatpush.msra.mxu0 0.0
    %190 = vmatpush.msra.mxu0 0.0
    %191 = vmatpush.msra.mxu0 0.0
    %192 = vmatpush.msra.mxu0 0.0
    %193 = vmatpush.msra.mxu0 %v69
    %194 = vmatpush.msra.mxu0 %v68
    %195 = vmatpush.msra.mxu0 %v67
    %196 = vmatpush.msra.mxu0 %v66
    %197 = vmatmul.f32.gmra.mxu0 %v179
    %v198 = vpop.f32.mrf.mxu0
    %v199 = vadd.f32 0.0, %v198
    %200 = vdwg.mxu0
    %v201 = vadd.f32 %v96, %v199
    %v202 = vtanh.pop %v201
    %v204 = vsel %vm127, %v202, 0
    %206 = vmatpush.msra.mxu0 0.0
    %207 = vmatpush.msra.mxu0 0.0
    %208 = vmatpush.msra.mxu0 0.0
    %209 = vmatpush.msra.mxu0 0.0
    %210 = vmatpush.msra.mxu0 0.0
    %211 = vmatpush.msra.mxu0 0.0
    %212 = vmatpush.msra.mxu0 0.0
    %213 = vmatpush.msra.mxu0 0.0
    %214 = vmatpush.msra.mxu0 0.0
    %215 = vmatpush.msra.mxu0 0.0
    %216 = vmatpush.msra.mxu0 0.0
    %217 = vmatpush.msra.mxu0 0.0
    %218 = vmatpush.msra.mxu0 %v69
    %219 = vmatpush.msra.mxu0 %v68
    %220 = vmatpush.msra.mxu0 %v67
    %221 = vmatpush.msra.mxu0 %v66
    %222 = vmatmul.f32.gmra.mxu0 %v204
    %v223 = vpop.f32.mrf.mxu0
    %v224 = vadd.f32 0.0, %v223
    %225 = vdwg.mxu0
    %v226 = vadd.f32 %v102, %v224
    %v227 = vtanh.pop %v226
    %v229 = vsel %vm127, %v227, 0
    %231 = vmatpush.msra.mxu0 0.0
    %232 = vmatpush.msra.mxu0 0.0
    %233 = vmatpush.msra.mxu0 0.0
    %234 = vmatpush.msra.mxu0 0.0
    %235 = vmatpush.msra.mxu0 0.0
    %236 = vmatpush.msra.mxu0 0.0
    %237 = vmatpush.msra.mxu0 0.0
    %238 = vmatpush.msra.mxu0 0.0
    %239 = vmatpush.msra.mxu0 0.0
    %240 = vmatpush.msra.mxu0 0.0
    %241 = vmatpush.msra.mxu0 0.0
    %242 = vmatpush.msra.mxu0 0.0
    %243 = vmatpush.msra.mxu0 %v69
    %244 = vmatpush.msra.mxu0 %v68
    %245 = vmatpush.msra.mxu0 %v67
    %246 = vmatpush.msra.mxu0 %v66
    %247 = vmatmul.f32.gmra.mxu0 %v229
    %v248 = vpop.f32.mrf.mxu0
    %v249 = vadd.f32 0.0, %v248
    %250 = vdwg.mxu0
    %v251 = vadd.f32 %v108, %v249
    %v252 = vtanh.pop %v251
    %v254 = vsel %vm127, %v252, 0
    %256 = vmatpush.msra.mxu0 0.0
    %257 = vmatpush.msra.mxu0 0.0
    %258 = vmatpush.msra.mxu0 0.0
    %259 = vmatpush.msra.mxu0 0.0
    %260 = vmatpush.msra.mxu0 0.0
    %261 = vmatpush.msra.mxu0 0.0
    %262 = vmatpush.msra.mxu0 0.0
    %263 = vmatpush.msra.mxu0 0.0
    %264 = vmatpush.msra.mxu0 0.0
    %265 = vmatpush.msra.mxu0 0.0
    %266 = vmatpush.msra.mxu0 0.0
    %267 = vmatpush.msra.mxu0 0.0
    %268 = vmatpush.msra.mxu0 %v69
    %269 = vmatpush.msra.mxu0 %v68
    %270 = vmatpush.msra.mxu0 %v67
    %271 = vmatpush.msra.mxu0 %v66
    %272 = vmatmul.f32.gmra.mxu0 %v254
    %v273 = vpop.f32.mrf.mxu0
    %v274 = vadd.f32 0.0, %v273
    %275 = vdwg.mxu0
    %v276 = vadd.f32 %v114, %v274
    %v277 = vtanh.pop %v276
    %v279 = vsel %vm127, %v277, 0
    %281 = vmatpush.msra.mxu0 0.0
    %282 = vmatpush.msra.mxu0 0.0
    %283 = vmatpush.msra.mxu0 0.0
    %284 = vmatpush.msra.mxu0 0.0
    %285 = vmatpush.msra.mxu0 0.0
    %286 = vmatpush.msra.mxu0 0.0
    %287 = vmatpush.msra.mxu0 0.0
    %288 = vmatpush.msra.mxu0 0.0
    %289 = vmatpush.msra.mxu0 0.0
    %290 = vmatpush.msra.mxu0 0.0
    %291 = vmatpush.msra.mxu0 0.0
    %292 = vmatpush.msra.mxu0 0.0
    %293 = vmatpush.msra.mxu0 %v69
    %294 = vmatpush.msra.mxu0 %v68
    %295 = vmatpush.msra.mxu0 %v67
    %296 = vmatpush.msra.mxu0 %v66
    %297 = vmatmul.f32.gmra.mxu0 %v279
    %v298 = vpop.f32.mrf.mxu0
    %v299 = vadd.f32 0.0, %v298
    %300 = vdwg.mxu0
    %v301 = vadd.f32 %v120, %v299
    %v302 = vtanh.pop %v301
    %v304 = vsel %vm127, %v302, 0
    %306 = vmatpush.msra.mxu0 0.0
    %307 = vmatpush.msra.mxu0 0.0
    %308 = vmatpush.msra.mxu0 0.0
    %309 = vmatpush.msra.mxu0 0.0
    %310 = vmatpush.msra.mxu0 0.0
    %311 = vmatpush.msra.mxu0 0.0
    %312 = vmatpush.msra.mxu0 0.0
    %313 = vmatpush.msra.mxu0 0.0
    %314 = vmatpush.msra.mxu0 0.0
    %315 = vmatpush.msra.mxu0 0.0
    %316 = vmatpush.msra.mxu0 0.0
    %317 = vmatpush.msra.mxu0 0.0
    %318 = vmatpush.msra.mxu0 %v69
    %319 = vmatpush.msra.mxu0 %v68
    %320 = vmatpush.msra.mxu0 %v67
    %321 = vmatpush.msra.mxu0 %v66
    %322 = vmatmul.f32.gmra.mxu0 %v304
    %v323 = vpop.f32.mrf.mxu0
    %v324 = vadd.f32 0.0, %v323
    %325 = vdwg.mxu0
    %v326 = vadd.f32 %v126, %v324
    %v327 = vtanh.pop %v326
    %vm328 = vcmask 254976
    %329 = vst.msk [vmem:[#allocation9] sm:$0x3] %vm328, %v327
    %v331 = vperm.slane %v70, 0
    %v333 = vmul.f32 %v152, %v331
    %v334 = vsel %vm328, %v333, 0.0
    %335 = vadd.xlane.f32.xlu0 %v334
    %v336 = vpop.xlane.xlu0 %335
    %v338 = vperm.slane %v71, 0
    %v340 = vadd.f32 %v336, %v338
    %vm341 = vcmask 1024
    %342 = vst.msk [vmem:[#allocation8] sm:$0x3] %vm341, %v340
    %v343 = vmul.f32 %v177, %v331
    %v344 = vsel %vm328, %v343, 0.0
    %345 = vadd.xlane.f32.xlu0 %v344
    %v346 = vpop.xlane.xlu0 %345
    %v347 = vadd.f32 %v346, %v338
    %349 = vrot.lane.b32.xlu0 %v347, 1
    %v350 = vpop.permute.xlu0 %349
    %vm352 = vcmask 9224
    %353 = vst.msk [vmem:[#allocation8] sm:$0x3] %vm352, %v350
    %v354 = vmul.f32 %v202, %v331
    %v355 = vsel %vm328, %v354, 0.0
    %356 = vadd.xlane.f32.xlu0 %v355
    %v357 = vpop.xlane.xlu0 %356
    %v358 = vadd.f32 %v357, %v338
    %360 = vrot.lane.b32.xlu0 %v358, 2
    %v361 = vpop.permute.xlu0 %360
    %vm363 = vcmask 17424
    %364 = vst.msk [vmem:[#allocation8] sm:$0x3] %vm363, %v361
    %v365 = vmul.f32 %v227, %v331
    %v366 = vsel %vm328, %v365, 0.0
    %367 = vadd.xlane.f32.xlu0 %v366
    %v368 = vpop.xlane.xlu0 %367
    %v369 = vadd.f32 %v368, %v338
    %371 = vrot.lane.b32.xlu0 %v369, 3
    %v372 = vpop.permute.xlu0 %371
    %vm374 = vcmask 25624
    %375 = vst.msk [vmem:[#allocation8] sm:$0x3] %vm374, %v372
    %v376 = vmul.f32 %v252, %v331
    %v377 = vsel %vm328, %v376, 0.0
    %378 = vadd.xlane.f32.xlu0 %v377
    %v379 = vpop.xlane.xlu0 %378
    %v380 = vadd.f32 %v379, %v338
    %382 = vrot.lane.b32.xlu0 %v380, 4
    %v383 = vpop.permute.xlu0 %382
    %vm385 = vcmask 33824
    %386 = vst.msk [vmem:[#allocation8] sm:$0x3] %vm385, %v383
    %v387 = vmul.f32 %v277, %v331
    %v388 = vsel %vm328, %v387, 0.0
    %389 = vadd.xlane.f32.xlu0 %v388
    %v390 = vpop.xlane.xlu0 %389
    %v391 = vadd.f32 %v390, %v338
    %393 = vrot.lane.b32.xlu0 %v391, 5
    %v394 = vpop.permute.xlu0 %393
    %vm396 = vcmask 42024
    %397 = vst.msk [vmem:[#allocation8] sm:$0x3] %vm396, %v394
    %v398 = vmul.f32 %v302, %v331
    %v399 = vsel %vm328, %v398, 0.0
    %400 = vadd.xlane.f32.xlu0 %v399
    %v401 = vpop.xlane.xlu0 %400
    %v402 = vadd.f32 %v401, %v338
    %404 = vrot.lane.b32.xlu0 %v402, 6
    %v405 = vpop.permute.xlu0 %404
    %vm407 = vcmask 50224
    %408 = vst.msk [vmem:[#allocation8] sm:$0x3] %vm407, %v405
    %v409 = vmul.f32 %v327, %v331
    %v410 = vsel %vm328, %v409, 0.0
    %411 = vadd.xlane.f32.xlu0 %v410
    %v412 = vpop.xlane.xlu0 %411
    %v413 = vadd.f32 %v412, %v338
    %415 = vrot.lane.b32.xlu0 %v413, 7
    %v416 = vpop.permute.xlu0 %415
    %vm418 = vcmask 58424
    %419 = vst.msk [vmem:[#allocation8] sm:$0x3] %vm418, %v416
    // Predicated region
    $region38: #{tpu_custom_call.1} parent=1 // pred_check
      _
    $region39: #{tpu_custom_call.1} parent=1 // pred_check_branch
      %421 = sbr.rel (0) target = $region41
    $region40: #{tpu_custom_call.1} parent=1 // pred_region
      %423 = vsyncadd [#allocation5], 0
      %s425 = sshll.u32 [#allocation8], 4
      %s426 = int_to_ptr.vmem [resolvable:$true] %s425
      %s427 = sshll.u32 %s7, 4
      %s428 = int_to_ptr.hbm [resolvable:$true] %s427
      %430 = dma.vmem_to_hbm [thread:$0]  %s426, 32, %s428, [#allocation5]
    $region41: #{tpu_custom_call.1} parent=1 // pred_fallthru
      _
    // Predicated region
    $region42: #{tpu_custom_call.1} parent=1 // pred_check
      _
    $region43: #{tpu_custom_call.1} parent=1 // pred_check_branch
      %432 = sbr.rel (0) target = $region45
    $region44: #{tpu_custom_call.1} parent=1 // pred_region
      %434 = vsyncadd [#allocation10], 0
      %s436 = sshll.u32 [#allocation9], 4
      %s437 = int_to_ptr.vmem [resolvable:$true] %s436
      %s438 = sshll.u32 %s8, 4
      %s439 = int_to_ptr.hbm [resolvable:$true] %s438
      %441 = dma.vmem_to_hbm [thread:$0]  %s437, 32, %s439, [#allocation10]
    $region45: #{tpu_custom_call.1} parent=1 // pred_fallthru
      _
    // Predicated region
    $region46: #{tpu_custom_call.1} parent=1 // pred_check
      _
    $region47: #{tpu_custom_call.1} parent=1 // pred_check_branch
      %443 = sbr.rel (0) target = $region49
    $region48: #{tpu_custom_call.1} parent=1 // pred_region
      %445 = dma.done [#allocation5], 32
    $region49: #{tpu_custom_call.1} parent=1 // pred_fallthru
      _
    // Predicated region
    $region50: #{tpu_custom_call.1} parent=1 // pred_check
      _
    $region51: #{tpu_custom_call.1} parent=1 // pred_check_branch
      %447 = sbr.rel (0) target = $region53
    $region52: #{tpu_custom_call.1} parent=1 // pred_region
      %449 = dma.done [#allocation10], 32
    $region53: #{tpu_custom_call.1} parent=1 // pred_fallthru
      _
    %450 = vsyncpa [#allocation4], 1
    %451 = vsyncpa [#allocation7], 1
    %452 = vsyncpa [#allocation5], 1
    %453 = vsyncpa [#allocation10], 1

</llo_original>
